<compile_context>
chip_gen: v6e
topology: v6e:2x2x1
jax: 0.10.0
libtpu: 0.0.40
codegen_flags: <defaults>
</compile_context>

<pallas_src>
import functools

import jax
import jax.numpy as jnp
from jax.experimental import pallas as pl
from jax.experimental.pallas import tpu as pltpu


# ---------------------------------------------------------------------------
# Fused GRU + Linear kernel (single invocation, time loop unrolled in-kernel)
# ---------------------------------------------------------------------------
def gru_fc_kernel(x_ref, w_ih_ref, w_hh_ref, b_gi_ref, b_hn_ref,
                  w_fc_ref, b_fc_ref, o_ref, *, T, B, H):
    """Fused GRU (T unrolled steps) + Linear on the last 2 hidden states.

    x_ref:    (T*B, I)  time-major flattened input
    w_ih_ref: (I, 3H)   input->gate weights, gate order [r | z | n]
    w_hh_ref: (H, 3H)   hidden->gate weights, gate order [r | z | n]
    b_gi_ref: (1, 3H)   [b_ir + b_hr, b_iz + b_hz, b_in]
    b_hn_ref: (1, H)    b_hn (kept separate for the r * (.) term)
    w_fc_ref: (H, O)    final Linear weight (in, out)
    b_fc_ref: (1, O)    final Linear bias
    o_ref:    (2B, O)   rows [0:B) = fc(h_{T-2}), rows [B:2B) = fc(h_{T-1})
    """
    # Hoisted input projection: one MXU call covering all T timesteps.
    gi_all = (
        jnp.dot(x_ref[...], w_ih_ref[...], preferred_element_type=jnp.float32)
        + b_gi_ref[...]
    )  # (T*B, 3H)

    w_hh = w_hh_ref[...]
    b_hn = b_hn_ref[...]

    h = jnp.zeros((B, H), jnp.float32)      # h0 = 0 (PyTorch default)
    h_prev = h
    for t in range(T):                      # fully unrolled serial recurrence
        h_prev = h
        gi_t = gi_all[t * B:(t + 1) * B, :]                          # (B, 3H)
        gh = jnp.dot(h, w_hh, preferred_element_type=jnp.float32)    # (B, 3H)
        r = jax.nn.sigmoid(gi_t[:, 0:H] + gh[:, 0:H])
        z = jax.nn.sigmoid(gi_t[:, H:2 * H] + gh[:, H:2 * H])
        n = jnp.tanh(gi_t[:, 2 * H:3 * H] + r * (gh[:, 2 * H:3 * H] + b_hn))
        h = (1.0 - z) * n + z * h
    # h_prev == h_{T-2}, h == h_{T-1}

    # Fused final Linear on the last two hidden states (one small MXU call).
    h_last2 = jnp.concatenate([h_prev, h], axis=0)                   # (2B, H)
    o_ref[...] = (
        jnp.dot(h_last2, w_fc_ref[...], preferred_element_type=jnp.float32)
        + b_fc_ref[...]
    )


# ---------------------------------------------------------------------------
# Wrapper: pack gates / biases, call the fused kernel once
# ---------------------------------------------------------------------------
def lighter_student_forward(x, params):
    """GRU over (B, T, I) then Linear on the last 2 timesteps -> (B, 2, O)."""
    B, T, I = x.shape
    H = params["w_hh"].shape[-1]
    O = params["w_fc"].shape[-1]
    assert T >= 2, "output[:, -2:, :] requires at least 2 timesteps"

    # Pack gates [r, z, n] along the output (lane) dim; pre-add r/z biases.
    w_ih_p = jnp.concatenate([params["w_ih"][g] for g in range(3)], axis=1)   # (I, 3H)
    w_hh_p = jnp.concatenate([params["w_hh"][g] for g in range(3)], axis=1)   # (H, 3H)
    b_ih, b_hh = params["b_ih"], params["b_hh"]
    b_gi = jnp.concatenate(
        [b_ih[0] + b_hh[0], b_ih[1] + b_hh[1], b_ih[2]], axis=1)             # (1, 3H)
    b_hn = b_hh[2]                                                            # (1, H)

    # Time-major flatten (tiny: T*B*I floats) so the hoisted projection result
    # is sliced per timestep with contiguous (B, 3H) row blocks.
    x_flat = jnp.transpose(x, (1, 0, 2)).reshape(T * B, I)

    vmem = pl.BlockSpec(memory_space=pltpu.MemorySpace.VMEM)
    y_flat = pl.pallas_call(
        functools.partial(gru_fc_kernel, T=T, B=B, H=H),
        out_shape=jax.ShapeDtypeStruct((2 * B, O), jnp.float32),
        in_specs=[vmem] * 7,
        out_specs=vmem,
    )(x_flat, w_ih_p, w_hh_p, b_gi, b_hn, params["w_fc"], params["b_fc"])

    # rows [0:B) = t = T-2, rows [B:2B) = t = T-1  ->  (B, 2, O)
    return jnp.transpose(y_flat.reshape(2, B, O), (1, 0, 2))


# ---------------------------------------------------------------------------
# Pure-JAX reference (unpacked params, mirrors PyTorch GRU exactly)
# ---------------------------------------------------------------------------
def ref_forward(x, params):
    w_ih, w_hh = params["w_ih"], params["w_hh"]
    b_ih, b_hh = params["b_ih"], params["b_hh"]
    H = w_hh.shape[-1]

    def step(h, x_t):
        gi_r = x_t @ w_ih[0] + b_ih[0]
        gi_z = x_t @ w_ih[1] + b_ih[1]
        gi_n = x_t @ w_ih[2] + b_ih[2]
        gh_r = h @ w_hh[0] + b_hh[0]
        gh_z = h @ w_hh[1] + b_hh[1]
        gh_n = h @ w_hh[2] + b_hh[2]
        r = jax.nn.sigmoid(gi_r + gh_r)
        z = jax.nn.sigmoid(gi_z + gh_z)
        n = jnp.tanh(gi_n + r * gh_n)
        h_new = (1.0 - z) * n + z * h
        return h_new, h_new

    h0 = jnp.zeros((x.shape[0], H), jnp.float32)
    _, hs = jax.lax.scan(step, h0, jnp.transpose(x, (1, 0, 2)))
    hs = jnp.transpose(hs, (1, 0, 2))                  # (B, T, H)
    return hs[:, -2:, :] @ params["w_fc"] + params["b_fc"]


def init_params(key, input_size, hidden_size, output_size):
    """Deterministic synthetic init (PyTorch-style uniform(-1/sqrt(H), 1/sqrt(H)))."""
    k = jax.random.split(key, 6)
    s = 1.0 / jnp.sqrt(hidden_size)
    return {
        # per-gate weights, gate order [r, z, n]; stored pre-transposed (in, out)
        "w_ih": jax.random.uniform(k[0], (3, input_size, hidden_size),
                                   jnp.float32, -s, s),
        "w_hh": jax.random.uniform(k[1], (3, hidden_size, hidden_size),
                                   jnp.float32, -s, s),
        "b_ih": jax.random.uniform(k[2], (3, 1, hidden_size), jnp.float32, -s, s),
        "b_hh": jax.random.uniform(k[3], (3, 1, hidden_size), jnp.float32, -s, s),
        "w_fc": jax.random.uniform(k[4], (hidden_size, output_size),
                                   jnp.float32, -s, s),
        "b_fc": jax.random.uniform(k[5], (1, output_size), jnp.float32, -s, s),
    }


if __name__ == "__main__":
    B, T, INPUT, HIDDEN, OUT = 2, 8, 16, 32, 4

    key = jax.random.PRNGKey(0)
    kx, kp = jax.random.split(key)
    x = jax.random.normal(kx, (B, T, INPUT), jnp.float32)   # batch-first, like PyTorch
    params = init_params(kp, INPUT, HIDDEN, OUT)

    y = lighter_student_forward(x, params)
    y = jax.block_until_ready(y)
    assert y.shape == (B, 2, OUT), y.shape

    y_ref = jax.block_until_ready(ref_forward(x, params))
    assert jnp.allclose(y, y_ref, atol=1e-5, rtol=1e-5), (
        float(jnp.max(jnp.abs(y - y_ref)))
    )

    print("KERNEL_OK")
</pallas_src>

<mosaic_0001>
module attributes {stable_mosaic.version = 11 : i64} {
  func.func @gru_fc_kernel(%arg0: memref<16x16xf32, #tpu.memory_space<vmem>>, %arg1: memref<16x96xf32, #tpu.memory_space<vmem>>, %arg2: memref<32x96xf32, #tpu.memory_space<vmem>>, %arg3: memref<1x96xf32, #tpu.memory_space<vmem>>, %arg4: memref<1x32xf32, #tpu.memory_space<vmem>>, %arg5: memref<32x4xf32, #tpu.memory_space<vmem>>, %arg6: memref<1x4xf32, #tpu.memory_space<vmem>>, %arg7: memref<4x4xf32, #tpu.memory_space<vmem>>) attributes {dimension_semantics = [], scalar_prefetch = 0 : i64, scratch_operands = 0 : i64, tpu.core_type = #tpu.core_type<tc>} {
    %c0 = arith.constant 0 : index
    %c0_0 = arith.constant 0 : index
    %0 = vector.load %arg0[%c0, %c0_0] : memref<16x16xf32, #tpu.memory_space<vmem>>, vector<16x16xf32>
    %c0_1 = arith.constant 0 : index
    %c0_2 = arith.constant 0 : index
    %1 = vector.load %arg1[%c0_1, %c0_2] : memref<16x96xf32, #tpu.memory_space<vmem>>, vector<16x96xf32>
    %cst = arith.constant dense<0.000000e+00> : vector<16x96xf32>
    %2 = tpu.matmul %0, %1, %cst {dimension_numbers = #tpu.dot_dimension_numbers<[1], [0], [0], [1], [0, 0, 1, 1], [], []>} : vector<16x16xf32>, vector<16x96xf32>, vector<16x96xf32> -> vector<16x96xf32>
    %c0_3 = arith.constant 0 : index
    %c0_4 = arith.constant 0 : index
    %3 = vector.load %arg3[%c0_3, %c0_4] : memref<1x96xf32, #tpu.memory_space<vmem>>, vector<1x96xf32>
    %4 = vector.broadcast %3 : vector<1x96xf32> to vector<16x96xf32>
    %5 = arith.addf %2, %4 : vector<16x96xf32>
    %c0_5 = arith.constant 0 : index
    %c0_6 = arith.constant 0 : index
    %6 = vector.load %arg2[%c0_5, %c0_6] : memref<32x96xf32, #tpu.memory_space<vmem>>, vector<32x96xf32>
    %c0_7 = arith.constant 0 : index
    %c0_8 = arith.constant 0 : index
    %7 = vector.load %arg4[%c0_7, %c0_8] : memref<1x32xf32, #tpu.memory_space<vmem>>, vector<1x32xf32>
    %cst_9 = arith.constant 0.000000e+00 : f32
    %8 = vector.broadcast %cst_9 : f32 to vector<2x32xf32>
    %9 = vector.extract_strided_slice %5 {offsets = [0, 0], sizes = [2, 96], strides = [1, 1]} : vector<16x96xf32> to vector<2x96xf32>
    %cst_10 = arith.constant dense<0.000000e+00> : vector<2x96xf32>
    %10 = tpu.matmul %8, %6, %cst_10 {dimension_numbers = #tpu.dot_dimension_numbers<[1], [0], [0], [1], [0, 0, 1, 1], [], []>} : vector<2x32xf32>, vector<32x96xf32>, vector<2x96xf32> -> vector<2x96xf32>
    %11 = vector.extract_strided_slice %9 {offsets = [0, 0], sizes = [2, 32], strides = [1, 1]} : vector<2x96xf32> to vector<2x32xf32>
    %12 = vector.extract_strided_slice %10 {offsets = [0, 0], sizes = [2, 32], strides = [1, 1]} : vector<2x96xf32> to vector<2x32xf32>
    %13 = arith.addf %11, %12 : vector<2x32xf32>
    %14 = arith.negf %13 : vector<2x32xf32>
    %15 = math.exp %14 : vector<2x32xf32>
    %cst_11 = arith.constant 1.000000e+00 : f32
    %16 = vector.broadcast %cst_11 : f32 to vector<2x32xf32>
    %17 = arith.addf %16, %15 : vector<2x32xf32>
    %18 = arith.divf %16, %17 : vector<2x32xf32>
    %19 = vector.extract_strided_slice %9 {offsets = [0, 32], sizes = [2, 32], strides = [1, 1]} : vector<2x96xf32> to vector<2x32xf32>
    %20 = vector.extract_strided_slice %10 {offsets = [0, 32], sizes = [2, 32], strides = [1, 1]} : vector<2x96xf32> to vector<2x32xf32>
    %21 = arith.addf %19, %20 : vector<2x32xf32>
    %22 = arith.negf %21 : vector<2x32xf32>
    %23 = math.exp %22 : vector<2x32xf32>
    %cst_12 = arith.constant 1.000000e+00 : f32
    %24 = vector.broadcast %cst_12 : f32 to vector<2x32xf32>
    %25 = arith.addf %24, %23 : vector<2x32xf32>
    %26 = arith.divf %24, %25 : vector<2x32xf32>
    %27 = vector.extract_strided_slice %9 {offsets = [0, 64], sizes = [2, 32], strides = [1, 1]} : vector<2x96xf32> to vector<2x32xf32>
    %28 = vector.extract_strided_slice %10 {offsets = [0, 64], sizes = [2, 32], strides = [1, 1]} : vector<2x96xf32> to vector<2x32xf32>
    %29 = vector.broadcast %7 : vector<1x32xf32> to vector<2x32xf32>
    %30 = arith.addf %28, %29 : vector<2x32xf32>
    %31 = arith.mulf %18, %30 : vector<2x32xf32>
    %32 = arith.addf %27, %31 : vector<2x32xf32>
    %33 = math.tanh %32 : vector<2x32xf32>
    %cst_13 = arith.constant 1.000000e+00 : f32
    %34 = vector.broadcast %cst_13 : f32 to vector<2x32xf32>
    %35 = arith.subf %34, %26 : vector<2x32xf32>
    %36 = arith.mulf %35, %33 : vector<2x32xf32>
    %37 = arith.mulf %26, %8 : vector<2x32xf32>
    %38 = arith.addf %36, %37 : vector<2x32xf32>
    %39 = vector.extract_strided_slice %5 {offsets = [2, 0], sizes = [2, 96], strides = [1, 1]} : vector<16x96xf32> to vector<2x96xf32>
    %cst_14 = arith.constant dense<0.000000e+00> : vector<2x96xf32>
    %40 = tpu.matmul %38, %6, %cst_14 {dimension_numbers = #tpu.dot_dimension_numbers<[1], [0], [0], [1], [0, 0, 1, 1], [], []>} : vector<2x32xf32>, vector<32x96xf32>, vector<2x96xf32> -> vector<2x96xf32>
    %41 = vector.extract_strided_slice %39 {offsets = [0, 0], sizes = [2, 32], strides = [1, 1]} : vector<2x96xf32> to vector<2x32xf32>
    %42 = vector.extract_strided_slice %40 {offsets = [0, 0], sizes = [2, 32], strides = [1, 1]} : vector<2x96xf32> to vector<2x32xf32>
    %43 = arith.addf %41, %42 : vector<2x32xf32>
    %44 = arith.negf %43 : vector<2x32xf32>
    %45 = math.exp %44 : vector<2x32xf32>
    %cst_15 = arith.constant 1.000000e+00 : f32
    %46 = vector.broadcast %cst_15 : f32 to vector<2x32xf32>
    %47 = arith.addf %46, %45 : vector<2x32xf32>
    %48 = arith.divf %46, %47 : vector<2x32xf32>
    %49 = vector.extract_strided_slice %39 {offsets = [0, 32], sizes = [2, 32], strides = [1, 1]} : vector<2x96xf32> to vector<2x32xf32>
    %50 = vector.extract_strided_slice %40 {offsets = [0, 32], sizes = [2, 32], strides = [1, 1]} : vector<2x96xf32> to vector<2x32xf32>
    %51 = arith.addf %49, %50 : vector<2x32xf32>
    %52 = arith.negf %51 : vector<2x32xf32>
    %53 = math.exp %52 : vector<2x32xf32>
    %cst_16 = arith.constant 1.000000e+00 : f32
    %54 = vector.broadcast %cst_16 : f32 to vector<2x32xf32>
    %55 = arith.addf %54, %53 : vector<2x32xf32>
    %56 = arith.divf %54, %55 : vector<2x32xf32>
    %57 = vector.extract_strided_slice %39 {offsets = [0, 64], sizes = [2, 32], strides = [1, 1]} : vector<2x96xf32> to vector<2x32xf32>
    %58 = vector.extract_strided_slice %40 {offsets = [0, 64], sizes = [2, 32], strides = [1, 1]} : vector<2x96xf32> to vector<2x32xf32>
    %59 = vector.broadcast %7 : vector<1x32xf32> to vector<2x32xf32>
    %60 = arith.addf %58, %59 : vector<2x32xf32>
    %61 = arith.mulf %48, %60 : vector<2x32xf32>
    %62 = arith.addf %57, %61 : vector<2x32xf32>
    %63 = math.tanh %62 : vector<2x32xf32>
    %cst_17 = arith.constant 1.000000e+00 : f32
    %64 = vector.broadcast %cst_17 : f32 to vector<2x32xf32>
    %65 = arith.subf %64, %56 : vector<2x32xf32>
    %66 = arith.mulf %65, %63 : vector<2x32xf32>
    %67 = arith.mulf %56, %38 : vector<2x32xf32>
    %68 = arith.addf %66, %67 : vector<2x32xf32>
    %69 = vector.extract_strided_slice %5 {offsets = [4, 0], sizes = [2, 96], strides = [1, 1]} : vector<16x96xf32> to vector<2x96xf32>
    %cst_18 = arith.constant dense<0.000000e+00> : vector<2x96xf32>
    %70 = tpu.matmul %68, %6, %cst_18 {dimension_numbers = #tpu.dot_dimension_numbers<[1], [0], [0], [1], [0, 0, 1, 1], [], []>} : vector<2x32xf32>, vector<32x96xf32>, vector<2x96xf32> -> vector<2x96xf32>
    %71 = vector.extract_strided_slice %69 {offsets = [0, 0], sizes = [2, 32], strides = [1, 1]} : vector<2x96xf32> to vector<2x32xf32>
    %72 = vector.extract_strided_slice %70 {offsets = [0, 0], sizes = [2, 32], strides = [1, 1]} : vector<2x96xf32> to vector<2x32xf32>
    %73 = arith.addf %71, %72 : vector<2x32xf32>
    %74 = arith.negf %73 : vector<2x32xf32>
    %75 = math.exp %74 : vector<2x32xf32>
    %cst_19 = arith.constant 1.000000e+00 : f32
    %76 = vector.broadcast %cst_19 : f32 to vector<2x32xf32>
    %77 = arith.addf %76, %75 : vector<2x32xf32>
    %78 = arith.divf %76, %77 : vector<2x32xf32>
    %79 = vector.extract_strided_slice %69 {offsets = [0, 32], sizes = [2, 32], strides = [1, 1]} : vector<2x96xf32> to vector<2x32xf32>
    %80 = vector.extract_strided_slice %70 {offsets = [0, 32], sizes = [2, 32], strides = [1, 1]} : vector<2x96xf32> to vector<2x32xf32>
    %81 = arith.addf %79, %80 : vector<2x32xf32>
    %82 = arith.negf %81 : vector<2x32xf32>
    %83 = math.exp %82 : vector<2x32xf32>
    %cst_20 = arith.constant 1.000000e+00 : f32
    %84 = vector.broadcast %cst_20 : f32 to vector<2x32xf32>
    %85 = arith.addf %84, %83 : vector<2x32xf32>
    %86 = arith.divf %84, %85 : vector<2x32xf32>
    %87 = vector.extract_strided_slice %69 {offsets = [0, 64], sizes = [2, 32], strides = [1, 1]} : vector<2x96xf32> to vector<2x32xf32>
    %88 = vector.extract_strided_slice %70 {offsets = [0, 64], sizes = [2, 32], strides = [1, 1]} : vector<2x96xf32> to vector<2x32xf32>
    %89 = vector.broadcast %7 : vector<1x32xf32> to vector<2x32xf32>
    %90 = arith.addf %88, %89 : vector<2x32xf32>
    %91 = arith.mulf %78, %90 : vector<2x32xf32>
    %92 = arith.addf %87, %91 : vector<2x32xf32>
    %93 = math.tanh %92 : vector<2x32xf32>
    %cst_21 = arith.constant 1.000000e+00 : f32
    %94 = vector.broadcast %cst_21 : f32 to vector<2x32xf32>
    %95 = arith.subf %94, %86 : vector<2x32xf32>
    %96 = arith.mulf %95, %93 : vector<2x32xf32>
    %97 = arith.mulf %86, %68 : vector<2x32xf32>
    %98 = arith.addf %96, %97 : vector<2x32xf32>
    %99 = vector.extract_strided_slice %5 {offsets = [6, 0], sizes = [2, 96], strides = [1, 1]} : vector<16x96xf32> to vector<2x96xf32>
    %cst_22 = arith.constant dense<0.000000e+00> : vector<2x96xf32>
    %100 = tpu.matmul %98, %6, %cst_22 {dimension_numbers = #tpu.dot_dimension_numbers<[1], [0], [0], [1], [0, 0, 1, 1], [], []>} : vector<2x32xf32>, vector<32x96xf32>, vector<2x96xf32> -> vector<2x96xf32>
    %101 = vector.extract_strided_slice %99 {offsets = [0, 0], sizes = [2, 32], strides = [1, 1]} : vector<2x96xf32> to vector<2x32xf32>
    %102 = vector.extract_strided_slice %100 {offsets = [0, 0], sizes = [2, 32], strides = [1, 1]} : vector<2x96xf32> to vector<2x32xf32>
    %103 = arith.addf %101, %102 : vector<2x32xf32>
    %104 = arith.negf %103 : vector<2x32xf32>
    %105 = math.exp %104 : vector<2x32xf32>
    %cst_23 = arith.constant 1.000000e+00 : f32
    %106 = vector.broadcast %cst_23 : f32 to vector<2x32xf32>
    %107 = arith.addf %106, %105 : vector<2x32xf32>
    %108 = arith.divf %106, %107 : vector<2x32xf32>
    %109 = vector.extract_strided_slice %99 {offsets = [0, 32], sizes = [2, 32], strides = [1, 1]} : vector<2x96xf32> to vector<2x32xf32>
    %110 = vector.extract_strided_slice %100 {offsets = [0, 32], sizes = [2, 32], strides = [1, 1]} : vector<2x96xf32> to vector<2x32xf32>
    %111 = arith.addf %109, %110 : vector<2x32xf32>
    %112 = arith.negf %111 : vector<2x32xf32>
    %113 = math.exp %112 : vector<2x32xf32>
    %cst_24 = arith.constant 1.000000e+00 : f32
    %114 = vector.broadcast %cst_24 : f32 to vector<2x32xf32>
    %115 = arith.addf %114, %113 : vector<2x32xf32>
    %116 = arith.divf %114, %115 : vector<2x32xf32>
    %117 = vector.extract_strided_slice %99 {offsets = [0, 64], sizes = [2, 32], strides = [1, 1]} : vector<2x96xf32> to vector<2x32xf32>
    %118 = vector.extract_strided_slice %100 {offsets = [0, 64], sizes = [2, 32], strides = [1, 1]} : vector<2x96xf32> to vector<2x32xf32>
    %119 = vector.broadcast %7 : vector<1x32xf32> to vector<2x32xf32>
    %120 = arith.addf %118, %119 : vector<2x32xf32>
    %121 = arith.mulf %108, %120 : vector<2x32xf32>
    %122 = arith.addf %117, %121 : vector<2x32xf32>
    %123 = math.tanh %122 : vector<2x32xf32>
    %cst_25 = arith.constant 1.000000e+00 : f32
    %124 = vector.broadcast %cst_25 : f32 to vector<2x32xf32>
    %125 = arith.subf %124, %116 : vector<2x32xf32>
    %126 = arith.mulf %125, %123 : vector<2x32xf32>
    %127 = arith.mulf %116, %98 : vector<2x32xf32>
    %128 = arith.addf %126, %127 : vector<2x32xf32>
    %129 = vector.extract_strided_slice %5 {offsets = [8, 0], sizes = [2, 96], strides = [1, 1]} : vector<16x96xf32> to vector<2x96xf32>
    %cst_26 = arith.constant dense<0.000000e+00> : vector<2x96xf32>
    %130 = tpu.matmul %128, %6, %cst_26 {dimension_numbers = #tpu.dot_dimension_numbers<[1], [0], [0], [1], [0, 0, 1, 1], [], []>} : vector<2x32xf32>, vector<32x96xf32>, vector<2x96xf32> -> vector<2x96xf32>
    %131 = vector.extract_strided_slice %129 {offsets = [0, 0], sizes = [2, 32], strides = [1, 1]} : vector<2x96xf32> to vector<2x32xf32>
    %132 = vector.extract_strided_slice %130 {offsets = [0, 0], sizes = [2, 32], strides = [1, 1]} : vector<2x96xf32> to vector<2x32xf32>
    %133 = arith.addf %131, %132 : vector<2x32xf32>
    %134 = arith.negf %133 : vector<2x32xf32>
    %135 = math.exp %134 : vector<2x32xf32>
    %cst_27 = arith.constant 1.000000e+00 : f32
    %136 = vector.broadcast %cst_27 : f32 to vector<2x32xf32>
    %137 = arith.addf %136, %135 : vector<2x32xf32>
    %138 = arith.divf %136, %137 : vector<2x32xf32>
    %139 = vector.extract_strided_slice %129 {offsets = [0, 32], sizes = [2, 32], strides = [1, 1]} : vector<2x96xf32> to vector<2x32xf32>
    %140 = vector.extract_strided_slice %130 {offsets = [0, 32], sizes = [2, 32], strides = [1, 1]} : vector<2x96xf32> to vector<2x32xf32>
    %141 = arith.addf %139, %140 : vector<2x32xf32>
    %142 = arith.negf %141 : vector<2x32xf32>
    %143 = math.exp %142 : vector<2x32xf32>
    %cst_28 = arith.constant 1.000000e+00 : f32
    %144 = vector.broadcast %cst_28 : f32 to vector<2x32xf32>
    %145 = arith.addf %144, %143 : vector<2x32xf32>
    %146 = arith.divf %144, %145 : vector<2x32xf32>
    %147 = vector.extract_strided_slice %129 {offsets = [0, 64], sizes = [2, 32], strides = [1, 1]} : vector<2x96xf32> to vector<2x32xf32>
    %148 = vector.extract_strided_slice %130 {offsets = [0, 64], sizes = [2, 32], strides = [1, 1]} : vector<2x96xf32> to vector<2x32xf32>
    %149 = vector.broadcast %7 : vector<1x32xf32> to vector<2x32xf32>
    %150 = arith.addf %148, %149 : vector<2x32xf32>
    %151 = arith.mulf %138, %150 : vector<2x32xf32>
    %152 = arith.addf %147, %151 : vector<2x32xf32>
    %153 = math.tanh %152 : vector<2x32xf32>
    %cst_29 = arith.constant 1.000000e+00 : f32
    %154 = vector.broadcast %cst_29 : f32 to vector<2x32xf32>
    %155 = arith.subf %154, %146 : vector<2x32xf32>
    %156 = arith.mulf %155, %153 : vector<2x32xf32>
    %157 = arith.mulf %146, %128 : vector<2x32xf32>
    %158 = arith.addf %156, %157 : vector<2x32xf32>
    %159 = vector.extract_strided_slice %5 {offsets = [10, 0], sizes = [2, 96], strides = [1, 1]} : vector<16x96xf32> to vector<2x96xf32>
    %cst_30 = arith.constant dense<0.000000e+00> : vector<2x96xf32>
    %160 = tpu.matmul %158, %6, %cst_30 {dimension_numbers = #tpu.dot_dimension_numbers<[1], [0], [0], [1], [0, 0, 1, 1], [], []>} : vector<2x32xf32>, vector<32x96xf32>, vector<2x96xf32> -> vector<2x96xf32>
    %161 = vector.extract_strided_slice %159 {offsets = [0, 0], sizes = [2, 32], strides = [1, 1]} : vector<2x96xf32> to vector<2x32xf32>
    %162 = vector.extract_strided_slice %160 {offsets = [0, 0], sizes = [2, 32], strides = [1, 1]} : vector<2x96xf32> to vector<2x32xf32>
    %163 = arith.addf %161, %162 : vector<2x32xf32>
    %164 = arith.negf %163 : vector<2x32xf32>
    %165 = math.exp %164 : vector<2x32xf32>
    %cst_31 = arith.constant 1.000000e+00 : f32
    %166 = vector.broadcast %cst_31 : f32 to vector<2x32xf32>
    %167 = arith.addf %166, %165 : vector<2x32xf32>
    %168 = arith.divf %166, %167 : vector<2x32xf32>
    %169 = vector.extract_strided_slice %159 {offsets = [0, 32], sizes = [2, 32], strides = [1, 1]} : vector<2x96xf32> to vector<2x32xf32>
    %170 = vector.extract_strided_slice %160 {offsets = [0, 32], sizes = [2, 32], strides = [1, 1]} : vector<2x96xf32> to vector<2x32xf32>
    %171 = arith.addf %169, %170 : vector<2x32xf32>
    %172 = arith.negf %171 : vector<2x32xf32>
    %173 = math.exp %172 : vector<2x32xf32>
    %cst_32 = arith.constant 1.000000e+00 : f32
    %174 = vector.broadcast %cst_32 : f32 to vector<2x32xf32>
    %175 = arith.addf %174, %173 : vector<2x32xf32>
    %176 = arith.divf %174, %175 : vector<2x32xf32>
    %177 = vector.extract_strided_slice %159 {offsets = [0, 64], sizes = [2, 32], strides = [1, 1]} : vector<2x96xf32> to vector<2x32xf32>
    %178 = vector.extract_strided_slice %160 {offsets = [0, 64], sizes = [2, 32], strides = [1, 1]} : vector<2x96xf32> to vector<2x32xf32>
    %179 = vector.broadcast %7 : vector<1x32xf32> to vector<2x32xf32>
    %180 = arith.addf %178, %179 : vector<2x32xf32>
    %181 = arith.mulf %168, %180 : vector<2x32xf32>
    %182 = arith.addf %177, %181 : vector<2x32xf32>
    %183 = math.tanh %182 : vector<2x32xf32>
    %cst_33 = arith.constant 1.000000e+00 : f32
    %184 = vector.broadcast %cst_33 : f32 to vector<2x32xf32>
    %185 = arith.subf %184, %176 : vector<2x32xf32>
    %186 = arith.mulf %185, %183 : vector<2x32xf32>
    %187 = arith.mulf %176, %158 : vector<2x32xf32>
    %188 = arith.addf %186, %187 : vector<2x32xf32>
    %189 = vector.extract_strided_slice %5 {offsets = [12, 0], sizes = [2, 96], strides = [1, 1]} : vector<16x96xf32> to vector<2x96xf32>
    %cst_34 = arith.constant dense<0.000000e+00> : vector<2x96xf32>
    %190 = tpu.matmul %188, %6, %cst_34 {dimension_numbers = #tpu.dot_dimension_numbers<[1], [0], [0], [1], [0, 0, 1, 1], [], []>} : vector<2x32xf32>, vector<32x96xf32>, vector<2x96xf32> -> vector<2x96xf32>
    %191 = vector.extract_strided_slice %189 {offsets = [0, 0], sizes = [2, 32], strides = [1, 1]} : vector<2x96xf32> to vector<2x32xf32>
    %192 = vector.extract_strided_slice %190 {offsets = [0, 0], sizes = [2, 32], strides = [1, 1]} : vector<2x96xf32> to vector<2x32xf32>
    %193 = arith.addf %191, %192 : vector<2x32xf32>
    %194 = arith.negf %193 : vector<2x32xf32>
    %195 = math.exp %194 : vector<2x32xf32>
    %cst_35 = arith.constant 1.000000e+00 : f32
    %196 = vector.broadcast %cst_35 : f32 to vector<2x32xf32>
    %197 = arith.addf %196, %195 : vector<2x32xf32>
    %198 = arith.divf %196, %197 : vector<2x32xf32>
    %199 = vector.extract_strided_slice %189 {offsets = [0, 32], sizes = [2, 32], strides = [1, 1]} : vector<2x96xf32> to vector<2x32xf32>
    %200 = vector.extract_strided_slice %190 {offsets = [0, 32], sizes = [2, 32], strides = [1, 1]} : vector<2x96xf32> to vector<2x32xf32>
    %201 = arith.addf %199, %200 : vector<2x32xf32>
    %202 = arith.negf %201 : vector<2x32xf32>
    %203 = math.exp %202 : vector<2x32xf32>
    %cst_36 = arith.constant 1.000000e+00 : f32
    %204 = vector.broadcast %cst_36 : f32 to vector<2x32xf32>
    %205 = arith.addf %204, %203 : vector<2x32xf32>
    %206 = arith.divf %204, %205 : vector<2x32xf32>
    %207 = vector.extract_strided_slice %189 {offsets = [0, 64], sizes = [2, 32], strides = [1, 1]} : vector<2x96xf32> to vector<2x32xf32>
    %208 = vector.extract_strided_slice %190 {offsets = [0, 64], sizes = [2, 32], strides = [1, 1]} : vector<2x96xf32> to vector<2x32xf32>
    %209 = vector.broadcast %7 : vector<1x32xf32> to vector<2x32xf32>
    %210 = arith.addf %208, %209 : vector<2x32xf32>
    %211 = arith.mulf %198, %210 : vector<2x32xf32>
    %212 = arith.addf %207, %211 : vector<2x32xf32>
    %213 = math.tanh %212 : vector<2x32xf32>
    %cst_37 = arith.constant 1.000000e+00 : f32
    %214 = vector.broadcast %cst_37 : f32 to vector<2x32xf32>
    %215 = arith.subf %214, %206 : vector<2x32xf32>
    %216 = arith.mulf %215, %213 : vector<2x32xf32>
    %217 = arith.mulf %206, %188 : vector<2x32xf32>
    %218 = arith.addf %216, %217 : vector<2x32xf32>
    %219 = vector.extract_strided_slice %5 {offsets = [14, 0], sizes = [2, 96], strides = [1, 1]} : vector<16x96xf32> to vector<2x96xf32>
    %cst_38 = arith.constant dense<0.000000e+00> : vector<2x96xf32>
    %220 = tpu.matmul %218, %6, %cst_38 {dimension_numbers = #tpu.dot_dimension_numbers<[1], [0], [0], [1], [0, 0, 1, 1], [], []>} : vector<2x32xf32>, vector<32x96xf32>, vector<2x96xf32> -> vector<2x96xf32>
    %221 = vector.extract_strided_slice %219 {offsets = [0, 0], sizes = [2, 32], strides = [1, 1]} : vector<2x96xf32> to vector<2x32xf32>
    %222 = vector.extract_strided_slice %220 {offsets = [0, 0], sizes = [2, 32], strides = [1, 1]} : vector<2x96xf32> to vector<2x32xf32>
    %223 = arith.addf %221, %222 : vector<2x32xf32>
    %224 = arith.negf %223 : vector<2x32xf32>
    %225 = math.exp %224 : vector<2x32xf32>
    %cst_39 = arith.constant 1.000000e+00 : f32
    %226 = vector.broadcast %cst_39 : f32 to vector<2x32xf32>
    %227 = arith.addf %226, %225 : vector<2x32xf32>
    %228 = arith.divf %226, %227 : vector<2x32xf32>
    %229 = vector.extract_strided_slice %219 {offsets = [0, 32], sizes = [2, 32], strides = [1, 1]} : vector<2x96xf32> to vector<2x32xf32>
    %230 = vector.extract_strided_slice %220 {offsets = [0, 32], sizes = [2, 32], strides = [1, 1]} : vector<2x96xf32> to vector<2x32xf32>
    %231 = arith.addf %229, %230 : vector<2x32xf32>
    %232 = arith.negf %231 : vector<2x32xf32>
    %233 = math.exp %232 : vector<2x32xf32>
    %cst_40 = arith.constant 1.000000e+00 : f32
    %234 = vector.broadcast %cst_40 : f32 to vector<2x32xf32>
    %235 = arith.addf %234, %233 : vector<2x32xf32>
    %236 = arith.divf %234, %235 : vector<2x32xf32>
    %237 = vector.extract_strided_slice %219 {offsets = [0, 64], sizes = [2, 32], strides = [1, 1]} : vector<2x96xf32> to vector<2x32xf32>
    %238 = vector.extract_strided_slice %220 {offsets = [0, 64], sizes = [2, 32], strides = [1, 1]} : vector<2x96xf32> to vector<2x32xf32>
    %239 = vector.broadcast %7 : vector<1x32xf32> to vector<2x32xf32>
    %240 = arith.addf %238, %239 : vector<2x32xf32>
    %241 = arith.mulf %228, %240 : vector<2x32xf32>
    %242 = arith.addf %237, %241 : vector<2x32xf32>
    %243 = math.tanh %242 : vector<2x32xf32>
    %cst_41 = arith.constant 1.000000e+00 : f32
    %244 = vector.broadcast %cst_41 : f32 to vector<2x32xf32>
    %245 = arith.subf %244, %236 : vector<2x32xf32>
    %246 = arith.mulf %245, %243 : vector<2x32xf32>
    %247 = arith.mulf %236, %218 : vector<2x32xf32>
    %248 = arith.addf %246, %247 : vector<2x32xf32>
    %249 = tpu.concatenate %218, %248 in 0 : vector<2x32xf32>, vector<2x32xf32> -> vector<4x32xf32>
    %c0_42 = arith.constant 0 : index
    %c0_43 = arith.constant 0 : index
    %250 = vector.load %arg5[%c0_42, %c0_43] : memref<32x4xf32, #tpu.memory_space<vmem>>, vector<32x4xf32>
    %cst_44 = arith.constant dense<0.000000e+00> : vector<4x4xf32>
    %251 = tpu.matmul %249, %250, %cst_44 {dimension_numbers = #tpu.dot_dimension_numbers<[1], [0], [0], [1], [0, 0, 1, 1], [], []>} : vector<4x32xf32>, vector<32x4xf32>, vector<4x4xf32> -> vector<4x4xf32>
    %c0_45 = arith.constant 0 : index
    %c0_46 = arith.constant 0 : index
    %252 = vector.load %arg6[%c0_45, %c0_46] : memref<1x4xf32, #tpu.memory_space<vmem>>, vector<1x4xf32>
    %253 = vector.broadcast %252 : vector<1x4xf32> to vector<4x4xf32>
    %254 = arith.addf %251, %253 : vector<4x4xf32>
    %c0_47 = arith.constant 0 : index
    %c0_48 = arith.constant 0 : index
    %255 = vector.load %arg7[%c0_47, %c0_48] : memref<4x4xf32, #tpu.memory_space<vmem>>, vector<4x4xf32>
    tpu.vector_store %arg7[%c0_47, %c0_48], %254 {strides = array<i32>} : memref<4x4xf32, #tpu.memory_space<vmem>>, vector<4x4xf32>,
    return
  }
}

</mosaic_0001>

<llo_original>
// kernel: tpu_custom_call.1
$region0: #{tpu_custom_call.1}
  #allocation0 [shape = 'u32[]', space=smem, size = 0x4, offset = 0x4, fixed_abs, tag = 'smem constant byte address 0x4 - core index']
  #allocation1 [shape = 'u32[144,128]{1,0:T(1,128)}', space=vmem, size = 0x12000, scoped, tag = 'internal scratch']
  %s0 = inlined_call_operand.hbm [shape: f32[16,16], index: 0, kind: input, shape index: {}]
  %s1 = inlined_call_operand.hbm [shape: f32[16,96], index: 1, kind: input, shape index: {}]
  %s2 = inlined_call_operand.vmem [shape: f32[32,96], index: 2, kind: input, shape index: {}]
  %s3 = inlined_call_operand.vmem [shape: f32[1,96], index: 3, kind: input, shape index: {}]
  %s4 = inlined_call_operand.vmem [shape: f32[1,32], index: 4, kind: input, shape index: {}]
  %s5 = inlined_call_operand.vmem [shape: f32[32,4], index: 5, kind: input, shape index: {}]
  %s6 = inlined_call_operand.vmem [shape: f32[1,4], index: 6, kind: input, shape index: {}]
  %s7 = inlined_call_operand.hbm [shape: f32[4,4], index: 7, kind: output, shape index: {}]
  %s8 = sld [smem:[#allocation0]]
  $region46: #{tpu_custom_call.1} parent=0
    _
  %s10 = ssub.s32 1, %s8
  %s11 = scalar_select 0, %s10, %s8
  $region1: #{tpu_custom_call.1} parent=0
    #allocation2 [shape = 'u8[8192]{0}', space=vmem, size = 0x2000, scoped, tag = 'input window, operand 0, single buffered']
    #allocation3 [shape = 's32[1]{0}', space=sflag, size = 0x4, scoped, tag = 'scoped memory for tpu_custom_call.1']
    #allocation4 [shape = 's32[1]{0}', space=sflag, size = 0x4, scoped, tag = 'scoped memory for tpu_custom_call.1']
    #allocation5 [shape = 'u8[8192]{0}', space=vmem, size = 0x2000, scoped, tag = 'input window, operand 1, single buffered']
    #allocation6 [shape = 's32[1]{0}', space=sflag, size = 0x4, scoped, tag = 'scoped memory for tpu_custom_call.1']
    #allocation7 [shape = 'u8[2048]{0}', space=vmem, size = 0x800, scoped, tag = 'output window, operand 0, single buffered']
    %12 = vsyncpa [#allocation3], 0
    %13 = vsyncpa [#allocation6], 0
    %14 = vsyncpa [#allocation4], 0
    // Predicated region
    $region2: #{tpu_custom_call.1} parent=1 // pred_check
      _
    $region3: #{tpu_custom_call.1} parent=1 // pred_check_branch
      %16 = sbr.rel (0) target = $region5
    $region4: #{tpu_custom_call.1} parent=1 // pred_region
      %s18 = ssub.s32 256, 256
      %19 = vsyncadd [#allocation3], %s18
      %s20 = sshll.u32 [#allocation2], 4
      %s21 = int_to_ptr.vmem [resolvable:$true] %s20
      %26 = dma.hbm_to_vmem [thread:$0]  %s0, 256, %s21, [#allocation3], 128, 128, 8
    $region5: #{tpu_custom_call.1} parent=1 // pred_fallthru
      _
    // Predicated region
    $region6: #{tpu_custom_call.1} parent=1 // pred_check
      _
    $region7: #{tpu_custom_call.1} parent=1 // pred_check_branch
      %28 = sbr.rel (0) target = $region9
    $region8: #{tpu_custom_call.1} parent=1 // pred_region
      %s30 = ssub.s32 256, 256
      %31 = vsyncadd [#allocation6], %s30
      %s32 = sshll.u32 [#allocation5], 4
      %s33 = int_to_ptr.vmem [resolvable:$true] %s32
      %38 = dma.hbm_to_vmem [thread:$0]  %s1, 256, %s33, [#allocation6], 128, 128, 8
    $region9: #{tpu_custom_call.1} parent=1 // pred_fallthru
      _
    // Predicated region
    $region10: #{tpu_custom_call.1} parent=1 // pred_check
      _
    $region11: #{tpu_custom_call.1} parent=1 // pred_check_branch
      %40 = sbr.rel (0) target = $region13
    $region12: #{tpu_custom_call.1} parent=1 // pred_region
      _
    $region13: #{tpu_custom_call.1} parent=1 // pred_fallthru
      _
    // Predicated region
    $region14: #{tpu_custom_call.1} parent=1 // pred_check
      _
    $region15: #{tpu_custom_call.1} parent=1 // pred_check_branch
      %42 = sbr.rel (0) target = $region17
    $region16: #{tpu_custom_call.1} parent=1 // pred_region
      _
    $region17: #{tpu_custom_call.1} parent=1 // pred_fallthru
      _
    // Predicated region
    $region18: #{tpu_custom_call.1} parent=1 // pred_check
      _
    $region19: #{tpu_custom_call.1} parent=1 // pred_check_branch
      %44 = sbr.rel (0) target = $region21
    $region20: #{tpu_custom_call.1} parent=1 // pred_region
      _
    $region21: #{tpu_custom_call.1} parent=1 // pred_fallthru
      _
    // Predicated region
    $region22: #{tpu_custom_call.1} parent=1 // pred_check
      _
    $region23: #{tpu_custom_call.1} parent=1 // pred_check_branch
      %46 = sbr.rel (0) target = $region25
    $region24: #{tpu_custom_call.1} parent=1 // pred_region
      _
    $region25: #{tpu_custom_call.1} parent=1 // pred_fallthru
      _
    // Predicated region
    $region26: #{tpu_custom_call.1} parent=1 // pred_check
      _
    $region27: #{tpu_custom_call.1} parent=1 // pred_check_branch
      %48 = sbr.rel (0) target = $region29
    $region28: #{tpu_custom_call.1} parent=1 // pred_region
      _
    $region29: #{tpu_custom_call.1} parent=1 // pred_fallthru
      _
    // Predicated region
    $region30: #{tpu_custom_call.1} parent=1 // pred_check
      _
    $region31: #{tpu_custom_call.1} parent=1 // pred_check_branch
      %50 = sbr.rel (0) target = $region33
    $region32: #{tpu_custom_call.1} parent=1 // pred_region
      %51 = dma.done [#allocation3], 256
    $region33: #{tpu_custom_call.1} parent=1 // pred_fallthru
      _
    // Predicated region
    $region34: #{tpu_custom_call.1} parent=1 // pred_check
      _
    $region35: #{tpu_custom_call.1} parent=1 // pred_check_branch
      %53 = sbr.rel (0) target = $region37
    $region36: #{tpu_custom_call.1} parent=1 // pred_region
      %54 = dma.done [#allocation6], 256
    $region37: #{tpu_custom_call.1} parent=1 // pred_fallthru
      _
    %v55 = vld [vmem:[#allocation2] sm:$0xff]
    %v56 = vld [vmem:[#allocation2 + $0x8] sm:$0xff]
    %v57 = vld [vmem:[#allocation5] sm:$0xff]
    %v58 = vld [vmem:[#allocation5 + $0x8] sm:$0xff]
    %v59 = vld [vmem:[%s3] sm:$0x1]
    %v61 = vlaneseq
    %v62 = vshrl.u32 %v61, 7
    %v63 = vsub.s32 0, %v62
    %v64 = vrot.slane %v59, %v63
    %vm66 = vcmask 130048
    %v68 = vsel %vm66, %v55, 0
    %v71 = vsel %vm66, %v56, 0
    %73 = vmatprep.subr.mxu0 0.0
    %74 = vmatpush1.msra.mxu0 0.0
    %75 = vmatprep.subr.mxu0 0.0
    %76 = vmatpush1.msra.mxu0 0.0
    %77 = vmatprep.subr.mxu0 0.0
    %78 = vmatpush1.msra.mxu0 0.0
    %79 = vmatprep.subr.mxu0 0.0
    %80 = vmatpush1.msra.mxu0 0.0
    %81 = vmatprep.subr.mxu0 0.0
    %82 = vmatpush1.msra.mxu0 0.0
    %83 = vmatprep.subr.mxu0 0.0
    %84 = vmatpush1.msra.mxu0 0.0
    %85 = vmatprep.subr.mxu0 0.0
    %86 = vmatpush1.msra.mxu0 0.0
    %87 = vmatprep.subr.mxu0 0.0
    %88 = vmatpush1.msra.mxu0 0.0
    %89 = vmatprep.subr.mxu0 0.0
    %90 = vmatpush1.msra.mxu0 0.0
    %91 = vmatprep.subr.mxu0 0.0
    %92 = vmatpush1.msra.mxu0 0.0
    %93 = vmatprep.subr.mxu0 0.0
    %94 = vmatpush1.msra.mxu0 0.0
    %95 = vmatprep.subr.mxu0 0.0
    %96 = vmatpush1.msra.mxu0 0.0
    %97 = vmatprep.subr.mxu0 0.0
    %98 = vmatpush1.msra.mxu0 0.0
    %99 = vmatprep.subr.mxu0 0.0
    %100 = vmatpush1.msra.mxu0 0.0
    %101 = vmatprep.subr.mxu0 0.0
    %102 = vmatpush1.msra.mxu0 %v58
    %103 = vmatprep.subr.mxu0 0.0
    %104 = vmatpush1.msra.mxu0 %v57
    %105 = vmatprep.subr.mxu0 0.0
    %106 = vmatpush2.msra.mxu0 0.0
    %107 = vmatprep.subr.mxu0 0.0
    %108 = vmatpush2.msra.mxu0 0.0
    %109 = vmatprep.subr.mxu0 0.0
    %110 = vmatpush2.msra.mxu0 0.0
    %111 = vmatprep.subr.mxu0 0.0
    %112 = vmatpush2.msra.mxu0 0.0
    %113 = vmatprep.subr.mxu0 0.0
    %114 = vmatpush2.msra.mxu0 0.0
    %115 = vmatprep.subr.mxu0 0.0
    %116 = vmatpush2.msra.mxu0 0.0
    %117 = vmatprep.subr.mxu0 0.0
    %118 = vmatpush2.msra.mxu0 0.0
    %119 = vmatprep.subr.mxu0 0.0
    %120 = vmatpush2.msra.mxu0 0.0
    %121 = vmatprep.subr.mxu0 0.0
    %122 = vmatpush2.msra.mxu0 0.0
    %123 = vmatprep.subr.mxu0 0.0
    %124 = vmatpush2.msra.mxu0 0.0
    %125 = vmatprep.subr.mxu0 0.0
    %126 = vmatpush2.msra.mxu0 0.0
    %127 = vmatprep.subr.mxu0 0.0
    %128 = vmatpush2.msra.mxu0 0.0
    %129 = vmatprep.subr.mxu0 0.0
    %130 = vmatpush2.msra.mxu0 0.0
    %131 = vmatprep.subr.mxu0 0.0
    %132 = vmatpush2.msra.mxu0 0.0
    %133 = vmatprep.subr.mxu0 0.0
    %134 = vmatpush2.msra.mxu0 0.0
    %135 = vmatprep.subr.mxu0 0.0
    %136 = vmatpush2.msra.mxu0 0.0
    %137 = vmatprep.mubr.f32.mxu0 0.0
    %138 = vmatmul.mubr.f32.gmra.mxu0 %v68
    %v139 = vpop.f32.mrf.mxu0
    %v140 = vadd.f32 %v64, %v139
    %v141 = vpop.f32.mrf.mxu0
    %142 = vmatprep.mubr.f32.mxu0 0.0
    %143 = vmatmul.mubr.f32.gmra.mxu0 %v71
    %v144 = vpop.f32.mrf.mxu0
    %v145 = vadd.f32 %v64, %v144
    %v146 = vpop.f32.mrf.mxu0
    %147 = vdwg.mxu0
    %v148 = vld [vmem:[%s2] sm:$0xff]
    %v149 = vld [vmem:[%s2 + $0x8] sm:$0xff]
    %v150 = vld [vmem:[%s2 + $0x10] sm:$0xff]
    %v151 = vld [vmem:[%s2 + $0x18] sm:$0xff]
    %v152 = vld [vmem:[%s4] sm:$0x1]
    %vm153 = vcmask 261120
    %v155 = vsel %vm153, 0.0, 0
    %157 = vmatprep.subr.mxu0 0.0
    %158 = vmatpush1.msra.mxu0 0.0
    %159 = vmatprep.subr.mxu0 0.0
    %160 = vmatpush1.msra.mxu0 0.0
    %161 = vmatprep.subr.mxu0 0.0
    %162 = vmatpush1.msra.mxu0 0.0
    %163 = vmatprep.subr.mxu0 0.0
    %164 = vmatpush1.msra.mxu0 0.0
    %165 = vmatprep.subr.mxu0 0.0
    %166 = vmatpush1.msra.mxu0 0.0
    %167 = vmatprep.subr.mxu0 0.0
    %168 = vmatpush1.msra.mxu0 0.0
    %169 = vmatprep.subr.mxu0 0.0
    %170 = vmatpush1.msra.mxu0 0.0
    %171 = vmatprep.subr.mxu0 0.0
    %172 = vmatpush1.msra.mxu0 0.0
    %173 = vmatprep.subr.mxu0 0.0
    %174 = vmatpush1.msra.mxu0 0.0
    %175 = vmatprep.subr.mxu0 0.0
    %176 = vmatpush1.msra.mxu0 0.0
    %177 = vmatprep.subr.mxu0 0.0
    %178 = vmatpush1.msra.mxu0 0.0
    %179 = vmatprep.subr.mxu0 0.0
    %180 = vmatpush1.msra.mxu0 0.0
    %181 = vmatprep.subr.mxu0 0.0
    %182 = vmatpush1.msra.mxu0 %v151
    %183 = vmatprep.subr.mxu0 0.0
    %184 = vmatpush1.msra.mxu0 %v150
    %185 = vmatprep.subr.mxu0 0.0
    %186 = vmatpush1.msra.mxu0 %v149
    %187 = vmatprep.subr.mxu0 0.0
    %188 = vmatpush1.msra.mxu0 %v148
    %189 = vmatprep.subr.mxu0 0.0
    %190 = vmatpush2.msra.mxu0 0.0
    %191 = vmatprep.subr.mxu0 0.0
    %192 = vmatpush2.msra.mxu0 0.0
    %193 = vmatprep.subr.mxu0 0.0
    %194 = vmatpush2.msra.mxu0 0.0
    %195 = vmatprep.subr.mxu0 0.0
    %196 = vmatpush2.msra.mxu0 0.0
    %197 = vmatprep.subr.mxu0 0.0
    %198 = vmatpush2.msra.mxu0 0.0
    %199 = vmatprep.subr.mxu0 0.0
    %200 = vmatpush2.msra.mxu0 0.0
    %201 = vmatprep.subr.mxu0 0.0
    %202 = vmatpush2.msra.mxu0 0.0
    %203 = vmatprep.subr.mxu0 0.0
    %204 = vmatpush2.msra.mxu0 0.0
    %205 = vmatprep.subr.mxu0 0.0
    %206 = vmatpush2.msra.mxu0 0.0
    %207 = vmatprep.subr.mxu0 0.0
    %208 = vmatpush2.msra.mxu0 0.0
    %209 = vmatprep.subr.mxu0 0.0
    %210 = vmatpush2.msra.mxu0 0.0
    %211 = vmatprep.subr.mxu0 0.0
    %212 = vmatpush2.msra.mxu0 0.0
    %213 = vmatprep.subr.mxu0 0.0
    %214 = vmatpush2.msra.mxu0 0.0
    %215 = vmatprep.subr.mxu0 0.0
    %216 = vmatpush2.msra.mxu0 0.0
    %217 = vmatprep.subr.mxu0 0.0
    %218 = vmatpush2.msra.mxu0 0.0
    %219 = vmatprep.subr.mxu0 0.0
    %220 = vmatpush2.msra.mxu0 0.0
    %221 = vmatprep.mubr.f32.mxu0 0.0
    %222 = vmatmul.mubr.f32.gmra.mxu0 %v155
    %v223 = vpop.f32.mrf.mxu0
    %v224 = vadd.f32 0.0, %v223
    %v225 = vpop.f32.mrf.mxu0
    %226 = vdwg.mxu0
    %v227 = vadd.f32 %v140, %v224
    %v228 = vxor.u32 %v227, 2147483648
    %v229 = vmul.f32 %v228, 1.442695
    %v230 = vpow.pop %v229
    %v231 = vadd.f32 %v230, 1.0
    %v232 = vrcp.pop %v231
    %v233 = vmul.f32 1.0, %v232
    %v235 = vlaneseq
    %v236 = vshrl.u32 %v235, 7
    %v237 = vsub.s32 0, %v236
    %v238 = vrot.slane %v152, %v237
    %239 = vrot.lane.b32.xlu0 %v238, 64
    %v240 = vpop.permute.xlu0 %239
    %v242 = vadd.f32 %v224, %v240
    %244 = vrot.lane.b32.xlu0 %v242, 64
    %v245 = vpop.permute.xlu0 %244
    %v247 = vmul.f32 %v233, %v245
    %249 = vrot.lane.b32.xlu0 %v247, 64
    %v250 = vpop.permute.xlu0 %249
    %v252 = vadd.f32 %v140, %v250
    %v253 = vtanh.pop %v252
    %v254 = vsub.f32 1.0, %v233
    %256 = vrot.lane.b32.xlu0 %v253, 96
    %v257 = vpop.permute.xlu0 %256
    %v259 = vmul.f32 %v254, %v257
    %v260 = vmul.f32 %v233, 0.0
    %v261 = vadd.f32 %v259, %v260
    %263 = vrot.lane.b32.xlu0 %v261, 96
    %v264 = vpop.permute.xlu0 %263
    %v265 = vsel %vm153, %v264, 0
    %267 = vmatprep.subr.mxu0 0.0
    %268 = vmatpush1.msra.mxu0 0.0
    %269 = vmatprep.subr.mxu0 0.0
    %270 = vmatpush1.msra.mxu0 0.0
    %271 = vmatprep.subr.mxu0 0.0
    %272 = vmatpush1.msra.mxu0 0.0
    %273 = vmatprep.subr.mxu0 0.0
    %274 = vmatpush1.msra.mxu0 0.0
    %275 = vmatprep.subr.mxu0 0.0
    %276 = vmatpush1.msra.mxu0 0.0
    %277 = vmatprep.subr.mxu0 0.0
    %278 = vmatpush1.msra.mxu0 0.0
    %279 = vmatprep.subr.mxu0 0.0
    %280 = vmatpush1.msra.mxu0 0.0
    %281 = vmatprep.subr.mxu0 0.0
    %282 = vmatpush1.msra.mxu0 0.0
    %283 = vmatprep.subr.mxu0 0.0
    %284 = vmatpush1.msra.mxu0 0.0
    %285 = vmatprep.subr.mxu0 0.0
    %286 = vmatpush1.msra.mxu0 0.0
    %287 = vmatprep.subr.mxu0 0.0
    %288 = vmatpush1.msra.mxu0 0.0
    %289 = vmatprep.subr.mxu0 0.0
    %290 = vmatpush1.msra.mxu0 0.0
    %291 = vmatprep.subr.mxu0 0.0
    %292 = vmatpush1.msra.mxu0 %v151
    %293 = vmatprep.subr.mxu0 0.0
    %294 = vmatpush1.msra.mxu0 %v150
    %295 = vmatprep.subr.mxu0 0.0
    %296 = vmatpush1.msra.mxu0 %v149
    %297 = vmatprep.subr.mxu0 0.0
    %298 = vmatpush1.msra.mxu0 %v148
    %299 = vmatprep.subr.mxu0 0.0
    %300 = vmatpush2.msra.mxu0 0.0
    %301 = vmatprep.subr.mxu0 0.0
    %302 = vmatpush2.msra.mxu0 0.0
    %303 = vmatprep.subr.mxu0 0.0
    %304 = vmatpush2.msra.mxu0 0.0
    %305 = vmatprep.subr.mxu0 0.0
    %306 = vmatpush2.msra.mxu0 0.0
    %307 = vmatprep.subr.mxu0 0.0
    %308 = vmatpush2.msra.mxu0 0.0
    %309 = vmatprep.subr.mxu0 0.0
    %310 = vmatpush2.msra.mxu0 0.0
    %311 = vmatprep.subr.mxu0 0.0
    %312 = vmatpush2.msra.mxu0 0.0
    %313 = vmatprep.subr.mxu0 0.0
    %314 = vmatpush2.msra.mxu0 0.0
    %315 = vmatprep.subr.mxu0 0.0
    %316 = vmatpush2.msra.mxu0 0.0
    %317 = vmatprep.subr.mxu0 0.0
    %318 = vmatpush2.msra.mxu0 0.0
    %319 = vmatprep.subr.mxu0 0.0
    %320 = vmatpush2.msra.mxu0 0.0
    %321 = vmatprep.subr.mxu0 0.0
    %322 = vmatpush2.msra.mxu0 0.0
    %323 = vmatprep.subr.mxu0 0.0
    %324 = vmatpush2.msra.mxu0 0.0
    %325 = vmatprep.subr.mxu0 0.0
    %326 = vmatpush2.msra.mxu0 0.0
    %327 = vmatprep.subr.mxu0 0.0
    %328 = vmatpush2.msra.mxu0 0.0
    %329 = vmatprep.subr.mxu0 0.0
    %330 = vmatpush2.msra.mxu0 0.0
    %331 = vmatprep.mubr.f32.mxu0 0.0
    %332 = vmatmul.mubr.f32.gmra.mxu0 %v265
    %v333 = vpop.f32.mrf.mxu0
    %v334 = vadd.f32 0.0, %v333
    %v335 = vpop.f32.mrf.mxu0
    %336 = vdwg.mxu0
    %v338 = vrot.slane %v334, 6
    %v340 = vadd.f32 %v140, %v338
    %v341 = vxor.u32 %v340, 2147483648
    %v342 = vmul.f32 %v341, 1.442695
    %v343 = vpow.pop %v342
    %v344 = vadd.f32 %v343, 1.0
    %v345 = vrcp.pop %v344
    %v346 = vmul.f32 1.0, %v345
    %v347 = vadd.f32 %v334, %v240
    %v349 = vrot.slane %v347, 6
    %350 = vrot.lane.b32.xlu0 %v349, 64
    %v351 = vpop.permute.xlu0 %350
    %v353 = vmul.f32 %v346, %v351
    %355 = vrot.lane.b32.xlu0 %v353, 64
    %v356 = vpop.permute.xlu0 %355
    %v358 = vadd.f32 %v140, %v356
    %v359 = vtanh.pop %v358
    %v360 = vsub.f32 1.0, %v346
    %362 = vrot.lane.b32.xlu0 %v359, 96
    %v363 = vpop.permute.xlu0 %362
    %v365 = vmul.f32 %v360, %v363
    %v366 = vrot.slane %v261, 6
    %v368 = vmul.f32 %v346, %v366
    %v369 = vadd.f32 %v365, %v368
    %v371 = vrot.slane %v369, 2
    %372 = vrot.lane.b32.xlu0 %v371, 96
    %v373 = vpop.permute.xlu0 %372
    %v374 = vsel %vm153, %v373, 0
    %376 = vmatprep.subr.mxu0 0.0
    %377 = vmatpush1.msra.mxu0 0.0
    %378 = vmatprep.subr.mxu0 0.0
    %379 = vmatpush1.msra.mxu0 0.0
    %380 = vmatprep.subr.mxu0 0.0
    %381 = vmatpush1.msra.mxu0 0.0
    %382 = vmatprep.subr.mxu0 0.0
    %383 = vmatpush1.msra.mxu0 0.0
    %384 = vmatprep.subr.mxu0 0.0
    %385 = vmatpush1.msra.mxu0 0.0
    %386 = vmatprep.subr.mxu0 0.0
    %387 = vmatpush1.msra.mxu0 0.0
    %388 = vmatprep.subr.mxu0 0.0
    %389 = vmatpush1.msra.mxu0 0.0
    %390 = vmatprep.subr.mxu0 0.0
    %391 = vmatpush1.msra.mxu0 0.0
    %392 = vmatprep.subr.mxu0 0.0
    %393 = vmatpush1.msra.mxu0 0.0
    %394 = vmatprep.subr.mxu0 0.0
    %395 = vmatpush1.msra.mxu0 0.0
    %396 = vmatprep.subr.mxu0 0.0
    %397 = vmatpush1.msra.mxu0 0.0
    %398 = vmatprep.subr.mxu0 0.0
    %399 = vmatpush1.msra.mxu0 0.0
    %400 = vmatprep.subr.mxu0 0.0
    %401 = vmatpush1.msra.mxu0 %v151
    %402 = vmatprep.subr.mxu0 0.0
    %403 = vmatpush1.msra.mxu0 %v150
    %404 = vmatprep.subr.mxu0 0.0
    %405 = vmatpush1.msra.mxu0 %v149
    %406 = vmatprep.subr.mxu0 0.0
    %407 = vmatpush1.msra.mxu0 %v148
    %408 = vmatprep.subr.mxu0 0.0
    %409 = vmatpush2.msra.mxu0 0.0
    %410 = vmatprep.subr.mxu0 0.0
    %411 = vmatpush2.msra.mxu0 0.0
    %412 = vmatprep.subr.mxu0 0.0
    %413 = vmatpush2.msra.mxu0 0.0
    %414 = vmatprep.subr.mxu0 0.0
    %415 = vmatpush2.msra.mxu0 0.0
    %416 = vmatprep.subr.mxu0 0.0
    %417 = vmatpush2.msra.mxu0 0.0
    %418 = vmatprep.subr.mxu0 0.0
    %419 = vmatpush2.msra.mxu0 0.0
    %420 = vmatprep.subr.mxu0 0.0
    %421 = vmatpush2.msra.mxu0 0.0
    %422 = vmatprep.subr.mxu0 0.0
    %423 = vmatpush2.msra.mxu0 0.0
    %424 = vmatprep.subr.mxu0 0.0
    %425 = vmatpush2.msra.mxu0 0.0
    %426 = vmatprep.subr.mxu0 0.0
    %427 = vmatpush2.msra.mxu0 0.0
    %428 = vmatprep.subr.mxu0 0.0
    %429 = vmatpush2.msra.mxu0 0.0
    %430 = vmatprep.subr.mxu0 0.0
    %431 = vmatpush2.msra.mxu0 0.0
    %432 = vmatprep.subr.mxu0 0.0
    %433 = vmatpush2.msra.mxu0 0.0
    %434 = vmatprep.subr.mxu0 0.0
    %435 = vmatpush2.msra.mxu0 0.0
    %436 = vmatprep.subr.mxu0 0.0
    %437 = vmatpush2.msra.mxu0 0.0
    %438 = vmatprep.subr.mxu0 0.0
    %439 = vmatpush2.msra.mxu0 0.0
    %440 = vmatprep.mubr.f32.mxu0 0.0
    %441 = vmatmul.mubr.f32.gmra.mxu0 %v374
    %v442 = vpop.f32.mrf.mxu0
    %v443 = vadd.f32 0.0, %v442
    %v444 = vpop.f32.mrf.mxu0
    %445 = vdwg.mxu0
    %v447 = vrot.slane %v443, 4
    %v449 = vadd.f32 %v140, %v447
    %v450 = vxor.u32 %v449, 2147483648
    %v451 = vmul.f32 %v450, 1.442695
    %v452 = vpow.pop %v451
    %v453 = vadd.f32 %v452, 1.0
    %v454 = vrcp.pop %v453
    %v455 = vmul.f32 1.0, %v454
    %v456 = vadd.f32 %v443, %v240
    %v458 = vrot.slane %v456, 4
    %459 = vrot.lane.b32.xlu0 %v458, 64
    %v460 = vpop.permute.xlu0 %459
    %v462 = vmul.f32 %v455, %v460
    %464 = vrot.lane.b32.xlu0 %v462, 64
    %v465 = vpop.permute.xlu0 %464
    %v467 = vadd.f32 %v140, %v465
    %v468 = vtanh.pop %v467
    %v469 = vsub.f32 1.0, %v455
    %471 = vrot.lane.b32.xlu0 %v468, 96
    %v472 = vpop.permute.xlu0 %471
    %v474 = vmul.f32 %v469, %v472
    %v475 = vrot.slane %v369, 6
    %v477 = vmul.f32 %v455, %v475
    %v478 = vadd.f32 %v474, %v477
    %v480 = vrot.slane %v478, 4
    %481 = vrot.lane.b32.xlu0 %v480, 96
    %v482 = vpop.permute.xlu0 %481
    %v483 = vsel %vm153, %v482, 0
    %485 = vmatprep.subr.mxu0 0.0
    %486 = vmatpush1.msra.mxu0 0.0
    %487 = vmatprep.subr.mxu0 0.0
    %488 = vmatpush1.msra.mxu0 0.0
    %489 = vmatprep.subr.mxu0 0.0
    %490 = vmatpush1.msra.mxu0 0.0
    %491 = vmatprep.subr.mxu0 0.0
    %492 = vmatpush1.msra.mxu0 0.0
    %493 = vmatprep.subr.mxu0 0.0
    %494 = vmatpush1.msra.mxu0 0.0
    %495 = vmatprep.subr.mxu0 0.0
    %496 = vmatpush1.msra.mxu0 0.0
    %497 = vmatprep.subr.mxu0 0.0
    %498 = vmatpush1.msra.mxu0 0.0
    %499 = vmatprep.subr.mxu0 0.0
    %500 = vmatpush1.msra.mxu0 0.0
    %501 = vmatprep.subr.mxu0 0.0
    %502 = vmatpush1.msra.mxu0 0.0
    %503 = vmatprep.subr.mxu0 0.0
    %504 = vmatpush1.msra.mxu0 0.0
    %505 = vmatprep.subr.mxu0 0.0
    %506 = vmatpush1.msra.mxu0 0.0
    %507 = vmatprep.subr.mxu0 0.0
    %508 = vmatpush1.msra.mxu0 0.0
    %509 = vmatprep.subr.mxu0 0.0
    %510 = vmatpush1.msra.mxu0 %v151
    %511 = vmatprep.subr.mxu0 0.0
    %512 = vmatpush1.msra.mxu0 %v150
    %513 = vmatprep.subr.mxu0 0.0
    %514 = vmatpush1.msra.mxu0 %v149
    %515 = vmatprep.subr.mxu0 0.0
    %516 = vmatpush1.msra.mxu0 %v148
    %517 = vmatprep.subr.mxu0 0.0
    %518 = vmatpush2.msra.mxu0 0.0
    %519 = vmatprep.subr.mxu0 0.0
    %520 = vmatpush2.msra.mxu0 0.0
    %521 = vmatprep.subr.mxu0 0.0
    %522 = vmatpush2.msra.mxu0 0.0
    %523 = vmatprep.subr.mxu0 0.0
    %524 = vmatpush2.msra.mxu0 0.0
    %525 = vmatprep.subr.mxu0 0.0
    %526 = vmatpush2.msra.mxu0 0.0
    %527 = vmatprep.subr.mxu0 0.0
    %528 = vmatpush2.msra.mxu0 0.0
    %529 = vmatprep.subr.mxu0 0.0
    %530 = vmatpush2.msra.mxu0 0.0
    %531 = vmatprep.subr.mxu0 0.0
    %532 = vmatpush2.msra.mxu0 0.0
    %533 = vmatprep.subr.mxu0 0.0
    %534 = vmatpush2.msra.mxu0 0.0
    %535 = vmatprep.subr.mxu0 0.0
    %536 = vmatpush2.msra.mxu0 0.0
    %537 = vmatprep.subr.mxu0 0.0
    %538 = vmatpush2.msra.mxu0 0.0
    %539 = vmatprep.subr.mxu0 0.0
    %540 = vmatpush2.msra.mxu0 0.0
    %541 = vmatprep.subr.mxu0 0.0
    %542 = vmatpush2.msra.mxu0 0.0
    %543 = vmatprep.subr.mxu0 0.0
    %544 = vmatpush2.msra.mxu0 0.0
    %545 = vmatprep.subr.mxu0 0.0
    %546 = vmatpush2.msra.mxu0 0.0
    %547 = vmatprep.subr.mxu0 0.0
    %548 = vmatpush2.msra.mxu0 0.0
    %549 = vmatprep.mubr.f32.mxu0 0.0
    %550 = vmatmul.mubr.f32.gmra.mxu0 %v483
    %v551 = vpop.f32.mrf.mxu0
    %v552 = vadd.f32 0.0, %v551
    %v553 = vpop.f32.mrf.mxu0
    %554 = vdwg.mxu0
    %v556 = vrot.slane %v552, 2
    %v558 = vadd.f32 %v140, %v556
    %v559 = vxor.u32 %v558, 2147483648
    %v560 = vmul.f32 %v559, 1.442695
    %v561 = vpow.pop %v560
    %v562 = vadd.f32 %v561, 1.0
    %v563 = vrcp.pop %v562
    %v564 = vmul.f32 1.0, %v563
    %v565 = vadd.f32 %v552, %v240
    %v567 = vrot.slane %v565, 2
    %568 = vrot.lane.b32.xlu0 %v567, 64
    %v569 = vpop.permute.xlu0 %568
    %v571 = vmul.f32 %v564, %v569
    %573 = vrot.lane.b32.xlu0 %v571, 64
    %v574 = vpop.permute.xlu0 %573
    %v576 = vadd.f32 %v140, %v574
    %v577 = vtanh.pop %v576
    %v578 = vsub.f32 1.0, %v564
    %580 = vrot.lane.b32.xlu0 %v577, 96
    %v581 = vpop.permute.xlu0 %580
    %v583 = vmul.f32 %v578, %v581
    %v584 = vrot.slane %v478, 6
    %v586 = vmul.f32 %v564, %v584
    %v587 = vadd.f32 %v583, %v586
    %v589 = vrot.slane %v587, 6
    %590 = vrot.lane.b32.xlu0 %v589, 96
    %v591 = vpop.permute.xlu0 %590
    %v592 = vsel %vm153, %v591, 0
    %594 = vmatprep.subr.mxu0 0.0
    %595 = vmatpush1.msra.mxu0 0.0
    %596 = vmatprep.subr.mxu0 0.0
    %597 = vmatpush1.msra.mxu0 0.0
    %598 = vmatprep.subr.mxu0 0.0
    %599 = vmatpush1.msra.mxu0 0.0
    %600 = vmatprep.subr.mxu0 0.0
    %601 = vmatpush1.msra.mxu0 0.0
    %602 = vmatprep.subr.mxu0 0.0
    %603 = vmatpush1.msra.mxu0 0.0
    %604 = vmatprep.subr.mxu0 0.0
    %605 = vmatpush1.msra.mxu0 0.0
    %606 = vmatprep.subr.mxu0 0.0
    %607 = vmatpush1.msra.mxu0 0.0
    %608 = vmatprep.subr.mxu0 0.0
    %609 = vmatpush1.msra.mxu0 0.0
    %610 = vmatprep.subr.mxu0 0.0
    %611 = vmatpush1.msra.mxu0 0.0
    %612 = vmatprep.subr.mxu0 0.0
    %613 = vmatpush1.msra.mxu0 0.0
    %614 = vmatprep.subr.mxu0 0.0
    %615 = vmatpush1.msra.mxu0 0.0
    %616 = vmatprep.subr.mxu0 0.0
    %617 = vmatpush1.msra.mxu0 0.0
    %618 = vmatprep.subr.mxu0 0.0
    %619 = vmatpush1.msra.mxu0 %v151
    %620 = vmatprep.subr.mxu0 0.0
    %621 = vmatpush1.msra.mxu0 %v150
    %622 = vmatprep.subr.mxu0 0.0
    %623 = vmatpush1.msra.mxu0 %v149
    %624 = vmatprep.subr.mxu0 0.0
    %625 = vmatpush1.msra.mxu0 %v148
    %626 = vmatprep.subr.mxu0 0.0
    %627 = vmatpush2.msra.mxu0 0.0
    %628 = vmatprep.subr.mxu0 0.0
    %629 = vmatpush2.msra.mxu0 0.0
    %630 = vmatprep.subr.mxu0 0.0
    %631 = vmatpush2.msra.mxu0 0.0
    %632 = vmatprep.subr.mxu0 0.0
    %633 = vmatpush2.msra.mxu0 0.0
    %634 = vmatprep.subr.mxu0 0.0
    %635 = vmatpush2.msra.mxu0 0.0
    %636 = vmatprep.subr.mxu0 0.0
    %637 = vmatpush2.msra.mxu0 0.0
    %638 = vmatprep.subr.mxu0 0.0
    %639 = vmatpush2.msra.mxu0 0.0
    %640 = vmatprep.subr.mxu0 0.0
    %641 = vmatpush2.msra.mxu0 0.0
    %642 = vmatprep.subr.mxu0 0.0
    %643 = vmatpush2.msra.mxu0 0.0
    %644 = vmatprep.subr.mxu0 0.0
    %645 = vmatpush2.msra.mxu0 0.0
    %646 = vmatprep.subr.mxu0 0.0
    %647 = vmatpush2.msra.mxu0 0.0
    %648 = vmatprep.subr.mxu0 0.0
    %649 = vmatpush2.msra.mxu0 0.0
    %650 = vmatprep.subr.mxu0 0.0
    %651 = vmatpush2.msra.mxu0 0.0
    %652 = vmatprep.subr.mxu0 0.0
    %653 = vmatpush2.msra.mxu0 0.0
    %654 = vmatprep.subr.mxu0 0.0
    %655 = vmatpush2.msra.mxu0 0.0
    %656 = vmatprep.subr.mxu0 0.0
    %657 = vmatpush2.msra.mxu0 0.0
    %658 = vmatprep.mubr.f32.mxu0 0.0
    %659 = vmatmul.mubr.f32.gmra.mxu0 %v592
    %v660 = vpop.f32.mrf.mxu0
    %v661 = vadd.f32 0.0, %v660
    %v662 = vpop.f32.mrf.mxu0
    %663 = vdwg.mxu0
    %v664 = vadd.f32 %v145, %v661
    %v665 = vxor.u32 %v664, 2147483648
    %v666 = vmul.f32 %v665, 1.442695
    %v667 = vpow.pop %v666
    %v668 = vadd.f32 %v667, 1.0
    %v669 = vrcp.pop %v668
    %v670 = vmul.f32 1.0, %v669
    %v671 = vadd.f32 %v661, %v240
    %673 = vrot.lane.b32.xlu0 %v671, 64
    %v674 = vpop.permute.xlu0 %673
    %v676 = vmul.f32 %v670, %v674
    %678 = vrot.lane.b32.xlu0 %v676, 64
    %v679 = vpop.permute.xlu0 %678
    %v681 = vadd.f32 %v145, %v679
    %v682 = vtanh.pop %v681
    %v683 = vsub.f32 1.0, %v670
    %685 = vrot.lane.b32.xlu0 %v682, 96
    %v686 = vpop.permute.xlu0 %685
    %v688 = vmul.f32 %v683, %v686
    %v690 = vmul.f32 %v670, %v589
    %v691 = vadd.f32 %v688, %v690
    %693 = vrot.lane.b32.xlu0 %v691, 96
    %v694 = vpop.permute.xlu0 %693
    %v695 = vsel %vm153, %v694, 0
    %697 = vmatprep.subr.mxu0 0.0
    %698 = vmatpush1.msra.mxu0 0.0
    %699 = vmatprep.subr.mxu0 0.0
    %700 = vmatpush1.msra.mxu0 0.0
    %701 = vmatprep.subr.mxu0 0.0
    %702 = vmatpush1.msra.mxu0 0.0
    %703 = vmatprep.subr.mxu0 0.0
    %704 = vmatpush1.msra.mxu0 0.0
    %705 = vmatprep.subr.mxu0 0.0
    %706 = vmatpush1.msra.mxu0 0.0
    %707 = vmatprep.subr.mxu0 0.0
    %708 = vmatpush1.msra.mxu0 0.0
    %709 = vmatprep.subr.mxu0 0.0
    %710 = vmatpush1.msra.mxu0 0.0
    %711 = vmatprep.subr.mxu0 0.0
    %712 = vmatpush1.msra.mxu0 0.0
    %713 = vmatprep.subr.mxu0 0.0
    %714 = vmatpush1.msra.mxu0 0.0
    %715 = vmatprep.subr.mxu0 0.0
    %716 = vmatpush1.msra.mxu0 0.0
    %717 = vmatprep.subr.mxu0 0.0
    %718 = vmatpush1.msra.mxu0 0.0
    %719 = vmatprep.subr.mxu0 0.0
    %720 = vmatpush1.msra.mxu0 0.0
    %721 = vmatprep.subr.mxu0 0.0
    %722 = vmatpush1.msra.mxu0 %v151
    %723 = vmatprep.subr.mxu0 0.0
    %724 = vmatpush1.msra.mxu0 %v150
    %725 = vmatprep.subr.mxu0 0.0
    %726 = vmatpush1.msra.mxu0 %v149
    %727 = vmatprep.subr.mxu0 0.0
    %728 = vmatpush1.msra.mxu0 %v148
    %729 = vmatprep.subr.mxu0 0.0
    %730 = vmatpush2.msra.mxu0 0.0
    %731 = vmatprep.subr.mxu0 0.0
    %732 = vmatpush2.msra.mxu0 0.0
    %733 = vmatprep.subr.mxu0 0.0
    %734 = vmatpush2.msra.mxu0 0.0
    %735 = vmatprep.subr.mxu0 0.0
    %736 = vmatpush2.msra.mxu0 0.0
    %737 = vmatprep.subr.mxu0 0.0
    %738 = vmatpush2.msra.mxu0 0.0
    %739 = vmatprep.subr.mxu0 0.0
    %740 = vmatpush2.msra.mxu0 0.0
    %741 = vmatprep.subr.mxu0 0.0
    %742 = vmatpush2.msra.mxu0 0.0
    %743 = vmatprep.subr.mxu0 0.0
    %744 = vmatpush2.msra.mxu0 0.0
    %745 = vmatprep.subr.mxu0 0.0
    %746 = vmatpush2.msra.mxu0 0.0
    %747 = vmatprep.subr.mxu0 0.0
    %748 = vmatpush2.msra.mxu0 0.0
    %749 = vmatprep.subr.mxu0 0.0
    %750 = vmatpush2.msra.mxu0 0.0
    %751 = vmatprep.subr.mxu0 0.0
    %752 = vmatpush2.msra.mxu0 0.0
    %753 = vmatprep.subr.mxu0 0.0
    %754 = vmatpush2.msra.mxu0 0.0
    %755 = vmatprep.subr.mxu0 0.0
    %756 = vmatpush2.msra.mxu0 0.0
    %757 = vmatprep.subr.mxu0 0.0
    %758 = vmatpush2.msra.mxu0 0.0
    %759 = vmatprep.subr.mxu0 0.0
    %760 = vmatpush2.msra.mxu0 0.0
    %761 = vmatprep.mubr.f32.mxu0 0.0
    %762 = vmatmul.mubr.f32.gmra.mxu0 %v695
    %v763 = vpop.f32.mrf.mxu0
    %v764 = vadd.f32 0.0, %v763
    %v765 = vpop.f32.mrf.mxu0
    %766 = vdwg.mxu0
    %v768 = vrot.slane %v764, 6
    %v770 = vadd.f32 %v145, %v768
    %v771 = vxor.u32 %v770, 2147483648
    %v772 = vmul.f32 %v771, 1.442695
    %v773 = vpow.pop %v772
    %v774 = vadd.f32 %v773, 1.0
    %v775 = vrcp.pop %v774
    %v776 = vmul.f32 1.0, %v775
    %v777 = vadd.f32 %v764, %v240
    %v779 = vrot.slane %v777, 6
    %780 = vrot.lane.b32.xlu0 %v779, 64
    %v781 = vpop.permute.xlu0 %780
    %v783 = vmul.f32 %v776, %v781
    %785 = vrot.lane.b32.xlu0 %v783, 64
    %v786 = vpop.permute.xlu0 %785
    %v788 = vadd.f32 %v145, %v786
    %v789 = vtanh.pop %v788
    %v790 = vsub.f32 1.0, %v776
    %792 = vrot.lane.b32.xlu0 %v789, 96
    %v793 = vpop.permute.xlu0 %792
    %v795 = vmul.f32 %v790, %v793
    %v796 = vrot.slane %v691, 6
    %v798 = vmul.f32 %v776, %v796
    %v799 = vadd.f32 %v795, %v798
    %v801 = vrot.slane %v799, 2
    %802 = vrot.lane.b32.xlu0 %v801, 96
    %v803 = vpop.permute.xlu0 %802
    %v804 = vsel %vm153, %v803, 0
    %806 = vmatprep.subr.mxu0 0.0
    %807 = vmatpush1.msra.mxu0 0.0
    %808 = vmatprep.subr.mxu0 0.0
    %809 = vmatpush1.msra.mxu0 0.0
    %810 = vmatprep.subr.mxu0 0.0
    %811 = vmatpush1.msra.mxu0 0.0
    %812 = vmatprep.subr.mxu0 0.0
    %813 = vmatpush1.msra.mxu0 0.0
    %814 = vmatprep.subr.mxu0 0.0
    %815 = vmatpush1.msra.mxu0 0.0
    %816 = vmatprep.subr.mxu0 0.0
    %817 = vmatpush1.msra.mxu0 0.0
    %818 = vmatprep.subr.mxu0 0.0
    %819 = vmatpush1.msra.mxu0 0.0
    %820 = vmatprep.subr.mxu0 0.0
    %821 = vmatpush1.msra.mxu0 0.0
    %822 = vmatprep.subr.mxu0 0.0
    %823 = vmatpush1.msra.mxu0 0.0
    %824 = vmatprep.subr.mxu0 0.0
    %825 = vmatpush1.msra.mxu0 0.0
    %826 = vmatprep.subr.mxu0 0.0
    %827 = vmatpush1.msra.mxu0 0.0
    %828 = vmatprep.subr.mxu0 0.0
    %829 = vmatpush1.msra.mxu0 0.0
    %830 = vmatprep.subr.mxu0 0.0
    %831 = vmatpush1.msra.mxu0 %v151
    %832 = vmatprep.subr.mxu0 0.0
    %833 = vmatpush1.msra.mxu0 %v150
    %834 = vmatprep.subr.mxu0 0.0
    %835 = vmatpush1.msra.mxu0 %v149
    %836 = vmatprep.subr.mxu0 0.0
    %837 = vmatpush1.msra.mxu0 %v148
    %838 = vmatprep.subr.mxu0 0.0
    %839 = vmatpush2.msra.mxu0 0.0
    %840 = vmatprep.subr.mxu0 0.0
    %841 = vmatpush2.msra.mxu0 0.0
    %842 = vmatprep.subr.mxu0 0.0
    %843 = vmatpush2.msra.mxu0 0.0
    %844 = vmatprep.subr.mxu0 0.0
    %845 = vmatpush2.msra.mxu0 0.0
    %846 = vmatprep.subr.mxu0 0.0
    %847 = vmatpush2.msra.mxu0 0.0
    %848 = vmatprep.subr.mxu0 0.0
    %849 = vmatpush2.msra.mxu0 0.0
    %850 = vmatprep.subr.mxu0 0.0
    %851 = vmatpush2.msra.mxu0 0.0
    %852 = vmatprep.subr.mxu0 0.0
    %853 = vmatpush2.msra.mxu0 0.0
    %854 = vmatprep.subr.mxu0 0.0
    %855 = vmatpush2.msra.mxu0 0.0
    %856 = vmatprep.subr.mxu0 0.0
    %857 = vmatpush2.msra.mxu0 0.0
    %858 = vmatprep.subr.mxu0 0.0
    %859 = vmatpush2.msra.mxu0 0.0
    %860 = vmatprep.subr.mxu0 0.0
    %861 = vmatpush2.msra.mxu0 0.0
    %862 = vmatprep.subr.mxu0 0.0
    %863 = vmatpush2.msra.mxu0 0.0
    %864 = vmatprep.subr.mxu0 0.0
    %865 = vmatpush2.msra.mxu0 0.0
    %866 = vmatprep.subr.mxu0 0.0
    %867 = vmatpush2.msra.mxu0 0.0
    %868 = vmatprep.subr.mxu0 0.0
    %869 = vmatpush2.msra.mxu0 0.0
    %870 = vmatprep.mubr.f32.mxu0 0.0
    %871 = vmatmul.mubr.f32.gmra.mxu0 %v804
    %v872 = vpop.f32.mrf.mxu0
    %v873 = vadd.f32 0.0, %v872
    %v874 = vpop.f32.mrf.mxu0
    %875 = vdwg.mxu0
    %v877 = vrot.slane %v873, 4
    %v879 = vadd.f32 %v145, %v877
    %v880 = vxor.u32 %v879, 2147483648
    %v881 = vmul.f32 %v880, 1.442695
    %v882 = vpow.pop %v881
    %v883 = vadd.f32 %v882, 1.0
    %v884 = vrcp.pop %v883
    %v885 = vmul.f32 1.0, %v884
    %v886 = vadd.f32 %v873, %v240
    %v888 = vrot.slane %v886, 4
    %889 = vrot.lane.b32.xlu0 %v888, 64
    %v890 = vpop.permute.xlu0 %889
    %v892 = vmul.f32 %v885, %v890
    %894 = vrot.lane.b32.xlu0 %v892, 64
    %v895 = vpop.permute.xlu0 %894
    %v897 = vadd.f32 %v145, %v895
    %v898 = vtanh.pop %v897
    %v899 = vsub.f32 1.0, %v885
    %901 = vrot.lane.b32.xlu0 %v898, 96
    %v902 = vpop.permute.xlu0 %901
    %v904 = vmul.f32 %v899, %v902
    %v905 = vrot.slane %v799, 6
    %v907 = vmul.f32 %v885, %v905
    %v908 = vadd.f32 %v904, %v907
    %v910 = vrot.slane %v908, 4
    %911 = vrot.lane.b32.xlu0 %v910, 96
    %v912 = vpop.permute.xlu0 %911
    %v913 = vsel %vm153, %v912, 0
    %915 = vmatprep.subr.mxu0 0.0
    %916 = vmatpush1.msra.mxu0 0.0
    %917 = vmatprep.subr.mxu0 0.0
    %918 = vmatpush1.msra.mxu0 0.0
    %919 = vmatprep.subr.mxu0 0.0
    %920 = vmatpush1.msra.mxu0 0.0
    %921 = vmatprep.subr.mxu0 0.0
    %922 = vmatpush1.msra.mxu0 0.0
    %923 = vmatprep.subr.mxu0 0.0
    %924 = vmatpush1.msra.mxu0 0.0
    %925 = vmatprep.subr.mxu0 0.0
    %926 = vmatpush1.msra.mxu0 0.0
    %927 = vmatprep.subr.mxu0 0.0
    %928 = vmatpush1.msra.mxu0 0.0
    %929 = vmatprep.subr.mxu0 0.0
    %930 = vmatpush1.msra.mxu0 0.0
    %931 = vmatprep.subr.mxu0 0.0
    %932 = vmatpush1.msra.mxu0 0.0
    %933 = vmatprep.subr.mxu0 0.0
    %934 = vmatpush1.msra.mxu0 0.0
    %935 = vmatprep.subr.mxu0 0.0
    %936 = vmatpush1.msra.mxu0 0.0
    %937 = vmatprep.subr.mxu0 0.0
    %938 = vmatpush1.msra.mxu0 0.0
    %939 = vmatprep.subr.mxu0 0.0
    %940 = vmatpush1.msra.mxu0 %v151
    %941 = vmatprep.subr.mxu0 0.0
    %942 = vmatpush1.msra.mxu0 %v150
    %943 = vmatprep.subr.mxu0 0.0
    %944 = vmatpush1.msra.mxu0 %v149
    %945 = vmatprep.subr.mxu0 0.0
    %946 = vmatpush1.msra.mxu0 %v148
    %947 = vmatprep.subr.mxu0 0.0
    %948 = vmatpush2.msra.mxu0 0.0
    %949 = vmatprep.subr.mxu0 0.0
    %950 = vmatpush2.msra.mxu0 0.0
    %951 = vmatprep.subr.mxu0 0.0
    %952 = vmatpush2.msra.mxu0 0.0
    %953 = vmatprep.subr.mxu0 0.0
    %954 = vmatpush2.msra.mxu0 0.0
    %955 = vmatprep.subr.mxu0 0.0
    %956 = vmatpush2.msra.mxu0 0.0
    %957 = vmatprep.subr.mxu0 0.0
    %958 = vmatpush2.msra.mxu0 0.0
    %959 = vmatprep.subr.mxu0 0.0
    %960 = vmatpush2.msra.mxu0 0.0
    %961 = vmatprep.subr.mxu0 0.0
    %962 = vmatpush2.msra.mxu0 0.0
    %963 = vmatprep.subr.mxu0 0.0
    %964 = vmatpush2.msra.mxu0 0.0
    %965 = vmatprep.subr.mxu0 0.0
    %966 = vmatpush2.msra.mxu0 0.0
    %967 = vmatprep.subr.mxu0 0.0
    %968 = vmatpush2.msra.mxu0 0.0
    %969 = vmatprep.subr.mxu0 0.0
    %970 = vmatpush2.msra.mxu0 0.0
    %971 = vmatprep.subr.mxu0 0.0
    %972 = vmatpush2.msra.mxu0 0.0
    %973 = vmatprep.subr.mxu0 0.0
    %974 = vmatpush2.msra.mxu0 0.0
    %975 = vmatprep.subr.mxu0 0.0
    %976 = vmatpush2.msra.mxu0 0.0
    %977 = vmatprep.subr.mxu0 0.0
    %978 = vmatpush2.msra.mxu0 0.0
    %979 = vmatprep.mubr.f32.mxu0 0.0
    %980 = vmatmul.mubr.f32.gmra.mxu0 %v913
    %v981 = vpop.f32.mrf.mxu0
    %v982 = vadd.f32 0.0, %v981
    %v983 = vpop.f32.mrf.mxu0
    %984 = vdwg.mxu0
    %v986 = vrot.slane %v982, 2
    %v988 = vadd.f32 %v145, %v986
    %v989 = vxor.u32 %v988, 2147483648
    %v990 = vmul.f32 %v989, 1.442695
    %v991 = vpow.pop %v990
    %v992 = vadd.f32 %v991, 1.0
    %v993 = vrcp.pop %v992
    %v994 = vmul.f32 1.0, %v993
    %v995 = vadd.f32 %v982, %v240
    %v997 = vrot.slane %v995, 2
    %998 = vrot.lane.b32.xlu0 %v997, 64
    %v999 = vpop.permute.xlu0 %998
    %v1001 = vmul.f32 %v994, %v999
    %1003 = vrot.lane.b32.xlu0 %v1001, 64
    %v1004 = vpop.permute.xlu0 %1003
    %v1006 = vadd.f32 %v145, %v1004
    %v1007 = vtanh.pop %v1006
    %v1008 = vsub.f32 1.0, %v994
    %1010 = vrot.lane.b32.xlu0 %v1007, 96
    %v1011 = vpop.permute.xlu0 %1010
    %v1013 = vmul.f32 %v1008, %v1011
    %v1014 = vrot.slane %v908, 6
    %v1016 = vmul.f32 %v994, %v1014
    %v1017 = vadd.f32 %v1013, %v1016
    %v1020 = vrot.slane %v1017, 4
    %vm1022 = vcmask 1041408
    %v1023 = vsel %vm1022, %v910, %v1020
    %v1024 = vld [vmem:[%s5] sm:$0xff]
    %v1025 = vld [vmem:[%s5 + $0x8] sm:$0xff]
    %v1026 = vld [vmem:[%s5 + $0x10] sm:$0xff]
    %v1027 = vld [vmem:[%s5 + $0x18] sm:$0xff]
    %v1028 = vld [vmem:[%s6] sm:$0x1]
    %v1030 = vlaneseq
    %v1031 = vshrl.u32 %v1030, 7
    %v1032 = vsub.s32 0, %v1031
    %v1033 = vrot.slane %v1028, %v1032
    %1036 = vrot.lane.b32.xlu0 %v1023, 96
    %v1037 = vpop.permute.xlu0 %1036
    %v1038 = vsel %vm153, %v1037, 0
    %1040 = vmatprep.subr.mxu0 0.0
    %1041 = vmatpush1.msra.mxu0 0.0
    %1042 = vmatprep.subr.mxu0 0.0
    %1043 = vmatpush1.msra.mxu0 0.0
    %1044 = vmatprep.subr.mxu0 0.0
    %1045 = vmatpush1.msra.mxu0 0.0
    %1046 = vmatprep.subr.mxu0 0.0
    %1047 = vmatpush1.msra.mxu0 0.0
    %1048 = vmatprep.subr.mxu0 0.0
    %1049 = vmatpush1.msra.mxu0 0.0
    %1050 = vmatprep.subr.mxu0 0.0
    %1051 = vmatpush1.msra.mxu0 0.0
    %1052 = vmatprep.subr.mxu0 0.0
    %1053 = vmatpush1.msra.mxu0 0.0
    %1054 = vmatprep.subr.mxu0 0.0
    %1055 = vmatpush1.msra.mxu0 0.0
    %1056 = vmatprep.subr.mxu0 0.0
    %1057 = vmatpush1.msra.mxu0 0.0
    %1058 = vmatprep.subr.mxu0 0.0
    %1059 = vmatpush1.msra.mxu0 0.0
    %1060 = vmatprep.subr.mxu0 0.0
    %1061 = vmatpush1.msra.mxu0 0.0
    %1062 = vmatprep.subr.mxu0 0.0
    %1063 = vmatpush1.msra.mxu0 0.0
    %1064 = vmatprep.subr.mxu0 0.0
    %1065 = vmatpush1.msra.mxu0 %v1027
    %1066 = vmatprep.subr.mxu0 0.0
    %1067 = vmatpush1.msra.mxu0 %v1026
    %1068 = vmatprep.subr.mxu0 0.0
    %1069 = vmatpush1.msra.mxu0 %v1025
    %1070 = vmatprep.subr.mxu0 0.0
    %1071 = vmatpush1.msra.mxu0 %v1024
    %1072 = vmatprep.subr.mxu0 0.0
    %1073 = vmatpush2.msra.mxu0 0.0
    %1074 = vmatprep.subr.mxu0 0.0
    %1075 = vmatpush2.msra.mxu0 0.0
    %1076 = vmatprep.subr.mxu0 0.0
    %1077 = vmatpush2.msra.mxu0 0.0
    %1078 = vmatprep.subr.mxu0 0.0
    %1079 = vmatpush2.msra.mxu0 0.0
    %1080 = vmatprep.subr.mxu0 0.0
    %1081 = vmatpush2.msra.mxu0 0.0
    %1082 = vmatprep.subr.mxu0 0.0
    %1083 = vmatpush2.msra.mxu0 0.0
    %1084 = vmatprep.subr.mxu0 0.0
    %1085 = vmatpush2.msra.mxu0 0.0
    %1086 = vmatprep.subr.mxu0 0.0
    %1087 = vmatpush2.msra.mxu0 0.0
    %1088 = vmatprep.subr.mxu0 0.0
    %1089 = vmatpush2.msra.mxu0 0.0
    %1090 = vmatprep.subr.mxu0 0.0
    %1091 = vmatpush2.msra.mxu0 0.0
    %1092 = vmatprep.subr.mxu0 0.0
    %1093 = vmatpush2.msra.mxu0 0.0
    %1094 = vmatprep.subr.mxu0 0.0
    %1095 = vmatpush2.msra.mxu0 0.0
    %1096 = vmatprep.subr.mxu0 0.0
    %1097 = vmatpush2.msra.mxu0 0.0
    %1098 = vmatprep.subr.mxu0 0.0
    %1099 = vmatpush2.msra.mxu0 0.0
    %1100 = vmatprep.subr.mxu0 0.0
    %1101 = vmatpush2.msra.mxu0 0.0
    %1102 = vmatprep.subr.mxu0 0.0
    %1103 = vmatpush2.msra.mxu0 0.0
    %1104 = vmatprep.mubr.f32.mxu0 0.0
    %1105 = vmatmul.mubr.f32.gmra.mxu0 %v1038
    %v1106 = vpop.f32.mrf.mxu0
    %v1107 = vadd.f32 %v1033, %v1106
    %v1108 = vpop.f32.mrf.mxu0
    %1109 = vdwg.mxu0
    %vm1110 = vcmask 27648
    %1111 = vst.msk [vmem:[#allocation7] sm:$0xf] %vm1110, %v1107
    // Predicated region
    $region38: #{tpu_custom_call.1} parent=1 // pred_check
      _
    $region39: #{tpu_custom_call.1} parent=1 // pred_check_branch
      %1113 = sbr.rel (0) target = $region41
    $region40: #{tpu_custom_call.1} parent=1 // pred_region
      %s1115 = ssub.s32 64, 64
      %1116 = vsyncadd [#allocation4], %s1115
      %s1118 = sshll.u32 [#allocation7], 4
      %s1119 = int_to_ptr.vmem [resolvable:$true] %s1118
      %1121 = dma.vmem_to_hbm [thread:$0]  %s1119, 64, %s7, [#allocation4]
    $region41: #{tpu_custom_call.1} parent=1 // pred_fallthru
      _
    // Predicated region
    $region42: #{tpu_custom_call.1} parent=1 // pred_check
      _
    $region43: #{tpu_custom_call.1} parent=1 // pred_check_branch
      %1123 = sbr.rel (0) target = $region45
    $region44: #{tpu_custom_call.1} parent=1 // pred_region
      %1124 = dma.done [#allocation4], 64
    $region45: #{tpu_custom_call.1} parent=1 // pred_fallthru
      _
    %1125 = vsyncpa [#allocation3], 1
    %1126 = vsyncpa [#allocation6], 1
    %1127 = vsyncpa [#allocation4], 1

</llo_original>
